<compile_context>
chip_gen: v7x
topology: tpu7x:2x2x1
jax: 0.10.0
libtpu: 0.0.40
codegen_flags: <defaults>
</compile_context>

<pallas_src>
from functools import partial

import jax
import jax.numpy as jnp
from jax.experimental import pallas as pl
from jax.experimental.pallas import tpu as pltpu

_LANES = 128
_MAX_TILE_ROWS = 4096     # 4096 x 128 f32 = 2 MiB per input per pipeline buffer
_NUM_SPLITS = 2           # leading "parallel" grid axis -> both TensorCores on v7x


def _iou_partials_kernel(x_ref, t_ref, inter_ref, total_ref, *,
                         num_tiles, rem, masked):
    """Accumulate per-core partial sums of sigmoid(x)*t and sigmoid(x)+t."""
    c = pl.program_id(0)              # core-split index ("parallel")
    i = pl.program_id(1)              # row-tile index within this split
    steps = pl.num_programs(1)
    tile_idx = c * steps + i          # global row-tile index
    tile_rows = x_ref.shape[0]
    acc_rows = inter_ref.shape[1]

    @pl.when(i == 0)
    def _():
        inter_ref[...] = jnp.zeros_like(inter_ref)
        total_ref[...] = jnp.zeros_like(total_ref)

    def accumulate(apply_mask):
        # Native-dtype loads; widen to f32 in-register (mandatory on v5e,
        # keeps bf16/int8 callers HBM-cheap).
        x = jax.nn.sigmoid(x_ref[...].astype(jnp.float32))
        t = t_ref[...].astype(jnp.float32)
        if apply_mask:
            # Block-local indices only (no global flat index -> no int32
            # overflow).  jnp.where (select) so sigmoid(garbage) NaNs in
            # out-of-range rows cannot propagate; never a multiplicative mask.
            row = jax.lax.broadcasted_iota(jnp.int32, (tile_rows, _LANES), 0)
            lane = jax.lax.broadcasted_iota(jnp.int32, (tile_rows, _LANES), 1)
            keep = (row * _LANES + lane) < rem
            x = jnp.where(keep, x, 0.0)
            t = jnp.where(keep, t, 0.0)
        # Fold the (tile_rows,128) tile into the small (acc_rows,128)
        # accumulator: free reshape (stays on (8,128) tile boundaries) +
        # axis-0 vreg adds; no tile-sized accumulator traffic.
        xr = x.reshape(-1, acc_rows, _LANES)
        tr = t.reshape(-1, acc_rows, _LANES)
        inter_ref[...] += jnp.sum(xr * tr, axis=0, keepdims=True)
        total_ref[...] += jnp.sum(xr + tr, axis=0, keepdims=True)

    if masked:
        # Only the last *valid* tile can contain padding / OOB rows; keep the
        # hot loop mask-free.  Tiles past num_tiles (overhang) are skipped.
        @pl.when(tile_idx < num_tiles - 1)
        def _():
            accumulate(False)

        @pl.when(tile_idx == num_tiles - 1)
        def _():
            accumulate(True)
    else:
        # Grid may over-cover by one tile when num_tiles is odd; skip it.
        @pl.when(tile_idx < num_tiles)
        def _():
            accumulate(False)


def iou_loss(inputs, targets, smooth=1.0):
    """Pallas TPU implementation of IoULoss.forward (returns a scalar f32)."""
    x = jnp.ravel(inputs)
    t = jnp.ravel(targets)
    n = x.shape[0]

    # Minimal pad so a lane-dense (rows, 128) view exists with rows % 8 == 0;
    # padded elements are masked out inside the kernel (sigmoid(0) != 0!).
    rows = pl.cdiv(n, _LANES)
    rows = pl.cdiv(rows, 8) * 8
    if rows * _LANES != n:
        x = jnp.pad(x, (0, rows * _LANES - n))
        t = jnp.pad(t, (0, rows * _LANES - n))
    x2 = x.reshape(rows, _LANES)
    t2 = t.reshape(rows, _LANES)

    # --- Tile / VMEM budgeting --------------------------------------------
    tile_rows = min(rows, _MAX_TILE_ROWS)
    num_tiles = pl.cdiv(rows, tile_rows)
    acc_rows = 64 if tile_rows % 64 == 0 else 8   # >=8 sublane-parallel chains

    in_block_bytes = tile_rows * _LANES * (x2.dtype.itemsize + t2.dtype.itemsize)
    tile_f32_bytes = tile_rows * _LANES * 4
    # 2 inputs x 2 pipeline buffers + ~8 tile-sized f32 intermediates + slack;
    # clamp to [16 MiB, 30 MiB]: above v5e's 16 MiB default scoped limit and
    # below v7x's 32 MiB scoped / 64 MiB physical VMEM.
    vmem_limit = int(min(max(2 * in_block_bytes + 8 * tile_f32_bytes + (2 << 20),
                             16 << 20), 30 << 20))

    # Two-way split of the row-tiles on a leading "parallel" axis: on v7x the
    # two TensorCores each stream half the input (~2x aggregate HBM); on
    # single-core v5e/v6e this is the same sequential sweep at no extra cost.
    num_splits = _NUM_SPLITS if num_tiles >= _NUM_SPLITS else 1
    steps = pl.cdiv(num_tiles, num_splits)

    # Valid elements in the last row-tile (exact Python int).
    rem = n - (num_tiles - 1) * tile_rows * _LANES
    masked = rem != tile_rows * _LANES

    def in_index_map(c, i):
        # Clamp the (at most one) overhanging tile of the last split; it is
        # skipped inside the kernel, so the duplicate fetch is harmless.
        return (jnp.minimum(c * steps + i, num_tiles - 1), 0)

    kernel = partial(_iou_partials_kernel, num_tiles=num_tiles, rem=rem,
                     masked=masked)

    part_shape = jax.ShapeDtypeStruct((num_splits, acc_rows, _LANES), jnp.float32)
    part_spec = pl.BlockSpec((1, acc_rows, _LANES), lambda c, i: (c, 0, 0))

    inter_p, total_p = pl.pallas_call(
        kernel,
        out_shape=(part_shape, part_shape),
        grid_spec=pltpu.PrefetchScalarGridSpec(
            num_scalar_prefetch=0,
            grid=(num_splits, steps),
            in_specs=[
                pl.BlockSpec((tile_rows, _LANES), in_index_map),
                pl.BlockSpec((tile_rows, _LANES), in_index_map),
            ],
            out_specs=(part_spec, part_spec),
        ),
        compiler_params=pltpu.CompilerParams(
            dimension_semantics=("parallel", "arbitrary"),
            vmem_limit_bytes=vmem_limit,
        ),
    )(x2, t2)

    # Tiny final combine + loss math (a handful of scalar ops in the wrapper).
    smooth = jnp.float32(smooth)
    inter = jnp.sum(inter_p)
    total = jnp.sum(total_p)
    union = total - inter
    return jnp.float32(1.0) - (inter + smooth) / (union + smooth)


def iou_loss_ref(inputs, targets, smooth=1.0):
    """Pure-JAX reference mirroring the PyTorch forward."""
    x = jax.nn.sigmoid(inputs.astype(jnp.float32)).reshape(-1)
    t = targets.astype(jnp.float32).reshape(-1)
    inter = jnp.sum(x * t)
    total = jnp.sum(x + t)
    union = total - inter
    return 1.0 - (inter + smooth) / (union + smooth)


if __name__ == "__main__":
    key = jax.random.PRNGKey(0)
    k1, k2, k3, k4, k5, k6 = jax.random.split(key, 6)

    # NCHW logits/targets: batch=2, channels=4, spatial=16x16 (lane-aligned).
    logits = jax.random.normal(k1, (2, 4, 16, 16), dtype=jnp.float32)
    targets = (jax.random.uniform(k2, (2, 4, 16, 16)) > 0.5).astype(jnp.float32)
    loss = jax.block_until_ready(iou_loss(logits, targets, smooth=1.0))
    ref = iou_loss_ref(logits, targets, smooth=1.0)
    assert jnp.allclose(loss, ref, atol=1e-5, rtol=1e-5), (loss, ref)

    # Ragged size (exercises the in-kernel tail mask): 2*3*7*5 = 210 elements.
    logits_r = jax.random.normal(k3, (2, 3, 7, 5), dtype=jnp.float32)
    targets_r = (jax.random.uniform(k4, (2, 3, 7, 5)) > 0.5).astype(jnp.float32)
    loss_r = jax.block_until_ready(iou_loss(logits_r, targets_r, smooth=1.0))
    ref_r = iou_loss_ref(logits_r, targets_r, smooth=1.0)
    assert jnp.allclose(loss_r, ref_r, atol=1e-5, rtol=1e-5), (loss_r, ref_r)

    # Multi-tile case exercising the two-way core split, the clamped
    # overhanging tile and the masked last tile (3 tiles over a (2,2) grid).
    logits_b = jax.random.normal(k5, (2, 2, 600, 512), dtype=jnp.float32)
    targets_b = (jax.random.uniform(k6, (2, 2, 600, 512)) > 0.5).astype(jnp.float32)
    loss_b = jax.block_until_ready(iou_loss(logits_b, targets_b, smooth=1.0))
    ref_b = iou_loss_ref(logits_b, targets_b, smooth=1.0)
    assert jnp.allclose(loss_b, ref_b, atol=1e-4, rtol=1e-4), (loss_b, ref_b)

    print("KERNEL_OK")
</pallas_src>

<mosaic_0001>
module attributes {stable_mosaic.version = 11 : i64} {
  func.func @_iou_partials_kernel(%arg0: i32, %arg1: i32, %arg2: memref<16x128xf32, #tpu.memory_space<vmem>>, %arg3: memref<16x128xf32, #tpu.memory_space<vmem>>, %arg4: memref<1x8x128xf32, #tpu.memory_space<vmem>>, %arg5: memref<1x8x128xf32, #tpu.memory_space<vmem>>) attributes {dimension_semantics = [#tpu.dimension_semantics<parallel>, #tpu.dimension_semantics<arbitrary>], iteration_bounds = array<i64: 1, 1>, scalar_prefetch = 0 : i64, scratch_operands = 0 : i64, tpu.core_type = #tpu.core_type<tc>, window_params = [{transform_indices = @transform_0, window_bounds = array<i64: 16, 128>}, {transform_indices = @transform_1, window_bounds = array<i64: 16, 128>}, {transform_indices = @transform_2, window_bounds = array<i64: 1, 8, 128>}, {transform_indices = @transform_3, window_bounds = array<i64: 1, 8, 128>}]} {
    %c1_i32 = arith.constant 1 : i32
    %0 = arith.muli %arg0, %c1_i32 : i32
    %1 = arith.addi %0, %arg1 : i32
    %c0_i32 = arith.constant 0 : i32
    %2 = arith.cmpi eq, %arg1, %c0_i32 : i32
    %3 = arith.extui %2 : i1 to i32
    %c0_i32_0 = arith.constant 0 : i32
    %4 = arith.cmpi ne, %3, %c0_i32_0 : i32
    scf.if %4 {
      %cst = arith.constant 0.000000e+00 : f32
      %8 = vector.broadcast %cst : f32 to vector<1x8x128xf32>
      %c0 = arith.constant 0 : index
      %c0_3 = arith.constant 0 : index
      %c0_4 = arith.constant 0 : index
      %9 = vector.load %arg4[%c0, %c0_3, %c0_4] : memref<1x8x128xf32, #tpu.memory_space<vmem>>, vector<1x8x128xf32>
      tpu.vector_store %arg4[%c0, %c0_3, %c0_4], %8 {strides = array<i32>} : memref<1x8x128xf32, #tpu.memory_space<vmem>>, vector<1x8x128xf32>,
      %cst_5 = arith.constant 0.000000e+00 : f32
      %10 = vector.broadcast %cst_5 : f32 to vector<1x8x128xf32>
      %c0_6 = arith.constant 0 : index
      %c0_7 = arith.constant 0 : index
      %c0_8 = arith.constant 0 : index
      %11 = vector.load %arg5[%c0_6, %c0_7, %c0_8] : memref<1x8x128xf32, #tpu.memory_space<vmem>>, vector<1x8x128xf32>
      tpu.vector_store %arg5[%c0_6, %c0_7, %c0_8], %10 {strides = array<i32>} : memref<1x8x128xf32, #tpu.memory_space<vmem>>, vector<1x8x128xf32>,
    } else {
    }
    %c1_i32_1 = arith.constant 1 : i32
    %5 = arith.cmpi slt, %1, %c1_i32_1 : i32
    %6 = arith.extui %5 : i1 to i32
    %c0_i32_2 = arith.constant 0 : i32
    %7 = arith.cmpi ne, %6, %c0_i32_2 : i32
    scf.if %7 {
      %c0 = arith.constant 0 : index
      %c0_3 = arith.constant 0 : index
      %8 = vector.load %arg2[%c0, %c0_3] : memref<16x128xf32, #tpu.memory_space<vmem>>, vector<16x128xf32>
      %9 = arith.negf %8 : vector<16x128xf32>
      %10 = math.exp %9 : vector<16x128xf32>
      %cst = arith.constant 1.000000e+00 : f32
      %11 = vector.broadcast %cst : f32 to vector<16x128xf32>
      %12 = arith.addf %11, %10 : vector<16x128xf32>
      %13 = arith.divf %11, %12 : vector<16x128xf32>
      %c0_4 = arith.constant 0 : index
      %c0_5 = arith.constant 0 : index
      %14 = vector.load %arg3[%c0_4, %c0_5] : memref<16x128xf32, #tpu.memory_space<vmem>>, vector<16x128xf32>
      %15 = vector.shape_cast %13 : vector<16x128xf32> to vector<2x8x128xf32>
      %16 = vector.shape_cast %14 : vector<16x128xf32> to vector<2x8x128xf32>
      %c0_6 = arith.constant 0 : index
      %c0_7 = arith.constant 0 : index
      %c0_8 = arith.constant 0 : index
      %17 = vector.load %arg4[%c0_6, %c0_7, %c0_8] : memref<1x8x128xf32, #tpu.memory_space<vmem>>, vector<1x8x128xf32>
      %18 = arith.mulf %15, %16 : vector<2x8x128xf32>
      %cst_9 = arith.constant dense<0.000000e+00> : vector<8x128xf32>
      %19 = vector.multi_reduction <add>, %18, %cst_9 [0] : vector<2x8x128xf32> to vector<8x128xf32>
      %20 = vector.shape_cast %19 : vector<8x128xf32> to vector<1x8x128xf32>
      %21 = arith.addf %17, %20 : vector<1x8x128xf32>
      %c0_10 = arith.constant 0 : index
      %c0_11 = arith.constant 0 : index
      %c0_12 = arith.constant 0 : index
      %22 = vector.load %arg4[%c0_10, %c0_11, %c0_12] : memref<1x8x128xf32, #tpu.memory_space<vmem>>, vector<1x8x128xf32>
      tpu.vector_store %arg4[%c0_10, %c0_11, %c0_12], %21 {strides = array<i32>} : memref<1x8x128xf32, #tpu.memory_space<vmem>>, vector<1x8x128xf32>,
      %c0_13 = arith.constant 0 : index
      %c0_14 = arith.constant 0 : index
      %c0_15 = arith.constant 0 : index
      %23 = vector.load %arg5[%c0_13, %c0_14, %c0_15] : memref<1x8x128xf32, #tpu.memory_space<vmem>>, vector<1x8x128xf32>
      %24 = arith.addf %15, %16 : vector<2x8x128xf32>
      %cst_16 = arith.constant dense<0.000000e+00> : vector<8x128xf32>
      %25 = vector.multi_reduction <add>, %24, %cst_16 [0] : vector<2x8x128xf32> to vector<8x128xf32>
      %26 = vector.shape_cast %25 : vector<8x128xf32> to vector<1x8x128xf32>
      %27 = arith.addf %23, %26 : vector<1x8x128xf32>
      %c0_17 = arith.constant 0 : index
      %c0_18 = arith.constant 0 : index
      %c0_19 = arith.constant 0 : index
      %28 = vector.load %arg5[%c0_17, %c0_18, %c0_19] : memref<1x8x128xf32, #tpu.memory_space<vmem>>, vector<1x8x128xf32>
      tpu.vector_store %arg5[%c0_17, %c0_18, %c0_19], %27 {strides = array<i32>} : memref<1x8x128xf32, #tpu.memory_space<vmem>>, vector<1x8x128xf32>,
    } else {
    }
    return
  }
  func.func @transform_0(%arg0: i32, %arg1: i32) -> (i32, i32) {
    %c1_i32 = arith.constant 1 : i32
    %0 = arith.muli %arg0, %c1_i32 : i32
    %1 = arith.addi %0, %arg1 : i32
    %c0_i32 = arith.constant 0 : i32
    %2 = arith.minsi %1, %c0_i32 : i32
    %c0_i32_0 = arith.constant 0 : i32
    %c0_i32_1 = arith.constant 0 : i32
    return %2, %c0_i32_0 : i32, i32
  }
  func.func @transform_1(%arg0: i32, %arg1: i32) -> (i32, i32) {
    %c1_i32 = arith.constant 1 : i32
    %0 = arith.muli %arg0, %c1_i32 : i32
    %1 = arith.addi %0, %arg1 : i32
    %c0_i32 = arith.constant 0 : i32
    %2 = arith.minsi %1, %c0_i32 : i32
    %c0_i32_0 = arith.constant 0 : i32
    %c0_i32_1 = arith.constant 0 : i32
    return %2, %c0_i32_0 : i32, i32
  }
  func.func @transform_2(%arg0: i32, %arg1: i32) -> (i32, i32, i32) {
    %c0_i32 = arith.constant 0 : i32
    %c0_i32_0 = arith.constant 0 : i32
    %c0_i32_1 = arith.constant 0 : i32
    return %arg0, %c0_i32, %c0_i32_0 : i32, i32, i32
  }
  func.func @transform_3(%arg0: i32, %arg1: i32) -> (i32, i32, i32) {
    %c0_i32 = arith.constant 0 : i32
    %c0_i32_0 = arith.constant 0 : i32
    %c0_i32_1 = arith.constant 0 : i32
    return %arg0, %c0_i32, %c0_i32_0 : i32, i32, i32
  }
}

</mosaic_0001>

<llo_original>
// kernel: tpu_custom_call.1
$region0: #{tpu_custom_call.1}
  #allocation0 [shape = 'u32[]', space=smem, size = 0x4, offset = 0x4, fixed_abs, tag = 'smem constant byte address 0x4 - core index']
  #allocation1 [shape = 'u32[144,128]{1,0:T(1,128)}', space=vmem, size = 0x12000, scoped, tag = 'internal scratch']
  %s0 = inlined_call_operand.hbm [shape: f32[16,128], index: 0, kind: input, shape index: {}]
  %s1 = inlined_call_operand.hbm [shape: f32[16,128], index: 1, kind: input, shape index: {}]
  %s2 = inlined_call_operand.hbm [shape: f32[1,8,128], index: 2, kind: output, shape index: {0}]
  %s3 = inlined_call_operand.hbm [shape: f32[1,8,128], index: 3, kind: output, shape index: {1}]
  %4 = xla_tuple %s2, %s3
  %s5 = sld [smem:[#allocation0]]
  $region42: #{tpu_custom_call.1} parent=0
    _
  %s7 = ssub.s32 1, %s5
  %s8 = scalar_select 0, %s7, %s5
  $region1: #{tpu_custom_call.1} parent=0
    #allocation2 [shape = 'u8[8192]{0}', space=vmem, size = 0x2000, scoped, tag = 'input window, operand 0, single buffered']
    #allocation3 [shape = 's32[1]{0}', space=sflag, size = 0x4, scoped, tag = 'scoped memory for tpu_custom_call.1']
    #allocation4 [shape = 's32[1]{0}', space=sflag, size = 0x4, scoped, tag = 'scoped memory for tpu_custom_call.1']
    #allocation5 [shape = 'u8[8192]{0}', space=vmem, size = 0x2000, scoped, tag = 'input window, operand 1, single buffered']
    #allocation6 [shape = 's32[1]{0}', space=sflag, size = 0x4, scoped, tag = 'scoped memory for tpu_custom_call.1']
    #allocation7 [shape = 'u8[4096]{0}', space=vmem, size = 0x1000, scoped, tag = 'output window, operand 0, single buffered']
    #allocation8 [shape = 'u8[4096]{0}', space=vmem, size = 0x1000, scoped, tag = 'output window, operand 1, single buffered']
    #allocation9 [shape = 's32[1]{0}', space=sflag, size = 0x4, scoped, tag = 'scoped memory for tpu_custom_call.1']
    %9 = vsyncpa [#allocation3], 0
    %10 = vsyncpa [#allocation6], 0
    %11 = vsyncpa [#allocation4], 0
    %12 = vsyncpa [#allocation9], 0
    // Predicated region
    $region2: #{tpu_custom_call.1} parent=1 // pred_check
      _
    $region3: #{tpu_custom_call.1} parent=1 // pred_check_branch
      %14 = sbr.rel (0) target = $region5
    $region4: #{tpu_custom_call.1} parent=1 // pred_region
      %s15 = sadd.s32 0, 0
      %p16 = scmp.lt.s32.totalorder %s15, 0
      %s17 = scalar_select %p16, %s15, 0
      %s18 = smul.u32 2, %s17
      %s20 = ssub.s32 256, 256
      %21 = vsyncadd [#allocation3], %s20
      %s22 = smul.addr %s18, 128
      %s23 = scalar_lea.hbm %s0, %s22
      %s24 = sshll.u32 [#allocation2], 4
      %s25 = int_to_ptr.vmem [resolvable:$true] %s24
      %30 = dma.hbm_to_vmem [thread:$0]  %s23, 256, %s25, [#allocation3], 128, 128, 8
    $region5: #{tpu_custom_call.1} parent=1 // pred_fallthru
      _
    // Predicated region
    $region6: #{tpu_custom_call.1} parent=1 // pred_check
      _
    $region7: #{tpu_custom_call.1} parent=1 // pred_check_branch
      %32 = sbr.rel (0) target = $region9
    $region8: #{tpu_custom_call.1} parent=1 // pred_region
      %s33 = sadd.s32 0, 0
      %p34 = scmp.lt.s32.totalorder %s33, 0
      %s35 = scalar_select %p34, %s33, 0
      %s36 = smul.u32 2, %s35
      %s38 = ssub.s32 256, 256
      %39 = vsyncadd [#allocation6], %s38
      %s40 = smul.addr %s36, 128
      %s41 = scalar_lea.hbm %s1, %s40
      %s42 = sshll.u32 [#allocation5], 4
      %s43 = int_to_ptr.vmem [resolvable:$true] %s42
      %48 = dma.hbm_to_vmem [thread:$0]  %s41, 256, %s43, [#allocation6], 128, 128, 8
    $region9: #{tpu_custom_call.1} parent=1 // pred_fallthru
      _
    // Predicated region
    $region10: #{tpu_custom_call.1} parent=1 // pred_check
      _
    $region11: #{tpu_custom_call.1} parent=1 // pred_check_branch
      %50 = sbr.rel (0) target = $region13
    $region12: #{tpu_custom_call.1} parent=1 // pred_region
      %51 = dma.done [#allocation3], 256
    $region13: #{tpu_custom_call.1} parent=1 // pred_fallthru
      _
    // Predicated region
    $region14: #{tpu_custom_call.1} parent=1 // pred_check
      _
    $region15: #{tpu_custom_call.1} parent=1 // pred_check_branch
      %53 = sbr.rel (0) target = $region17
    $region16: #{tpu_custom_call.1} parent=1 // pred_region
      %54 = dma.done [#allocation6], 256
    $region17: #{tpu_custom_call.1} parent=1 // pred_fallthru
      _
    %s55 = sadd.s32 0, 0
    %p56 = scmp.lt.s32.totalorder %s55, 0
    %s57 = scalar_select %p56, %s55, 0
    %s58 = smul.u32 2, %s57
    %s59 = sadd.s32 0, 0
    %p60 = scmp.lt.s32.totalorder %s59, 0
    %s61 = scalar_select %p60, %s59, 0
    %s62 = smul.u32 2, %s61
    %s63 = sadd.s32 0, 0
    %p64 = scmp.eq.s32.totalorder 0, 0
    // Predicated region
    $region18: #{tpu_custom_call.1} parent=1 // pred_check
      %p65 = pneg %p64
    $region19: #{tpu_custom_call.1} parent=1 // pred_check_branch
      %67 = sbr.rel (%p65) target = $region21
    $region20: #{tpu_custom_call.1} parent=1 // pred_region
      %68 = vst [vmem:[#allocation7] sm:$0xff] 0.0
      %69 = vst [vmem:[#allocation8] sm:$0xff] 0.0
    $region21: #{tpu_custom_call.1} parent=1 // pred_fallthru
      _
    %p70 = scmp.lt.s32.totalorder %s63, 1
    // Predicated region
    $region22: #{tpu_custom_call.1} parent=1 // pred_check
      %p71 = pneg %p70
    $region23: #{tpu_custom_call.1} parent=1 // pred_check_branch
      %73 = sbr.rel (%p71) target = $region25
    $region24: #{tpu_custom_call.1} parent=1 // pred_region
      %v74 = vld [vmem:[#allocation2] sm:$0xff]
      %v75 = vld [vmem:[#allocation2 + $0x8] sm:$0xff]
      %v76 = vxor.u32 %v74, 2147483648
      %v77 = vxor.u32 %v75, 2147483648
      %v78 = vmul.f32 %v76, 1.442695
      %v79 = vpow.pop %v78
      %v80 = vmul.f32 %v77, 1.442695
      %v81 = vpow.pop %v80
      %v82 = vadd.f32 %v79, 1.0
      %v83 = vadd.f32 %v81, 1.0
      %v84 = vrcp.pop %v82
      %v85 = vmul.f32 1.0, %v84
      %v86 = vrcp.pop %v83
      %v87 = vmul.f32 1.0, %v86
      %v88 = vld [vmem:[#allocation5] sm:$0xff]
      %v89 = vld [vmem:[#allocation5 + $0x8] sm:$0xff]
      %v90 = vld [vmem:[#allocation7] sm:$0xff]
      %v91 = vmul.f32 %v85, %v88
      %v92 = vmul.f32 %v87, %v89
      %v93 = vadd.f32 %v91, %v92
      %v94 = vadd.f32 %v90, %v93
      %95 = vst [vmem:[#allocation7] sm:$0xff] %v94
      %v96 = vld [vmem:[#allocation8] sm:$0xff]
      %v97 = vadd.f32 %v85, %v88
      %v98 = vadd.f32 %v87, %v89
      %v99 = vadd.f32 %v97, %v98
      %v100 = vadd.f32 %v96, %v99
      %101 = vst [vmem:[#allocation8] sm:$0xff] %v100
    $region25: #{tpu_custom_call.1} parent=1 // pred_fallthru
      _
    // Predicated region
    $region26: #{tpu_custom_call.1} parent=1 // pred_check
      _
    $region27: #{tpu_custom_call.1} parent=1 // pred_check_branch
      %103 = sbr.rel (0) target = $region29
    $region28: #{tpu_custom_call.1} parent=1 // pred_region
      %s105 = ssub.s32 128, 128
      %106 = vsyncadd [#allocation4], %s105
      %s108 = sshll.u32 [#allocation7], 4
      %s109 = int_to_ptr.vmem [resolvable:$true] %s108
      %111 = dma.vmem_to_hbm [thread:$0]  %s109, 128, %s2, [#allocation4]
    $region29: #{tpu_custom_call.1} parent=1 // pred_fallthru
      _
    // Predicated region
    $region30: #{tpu_custom_call.1} parent=1 // pred_check
      _
    $region31: #{tpu_custom_call.1} parent=1 // pred_check_branch
      %113 = sbr.rel (0) target = $region33
    $region32: #{tpu_custom_call.1} parent=1 // pred_region
      %s115 = ssub.s32 128, 128
      %116 = vsyncadd [#allocation9], %s115
      %s118 = sshll.u32 [#allocation8], 4
      %s119 = int_to_ptr.vmem [resolvable:$true] %s118
      %121 = dma.vmem_to_hbm [thread:$0]  %s119, 128, %s3, [#allocation9]
    $region33: #{tpu_custom_call.1} parent=1 // pred_fallthru
      _
    // Predicated region
    $region34: #{tpu_custom_call.1} parent=1 // pred_check
      _
    $region35: #{tpu_custom_call.1} parent=1 // pred_check_branch
      %123 = sbr.rel (0) target = $region37
    $region36: #{tpu_custom_call.1} parent=1 // pred_region
      %124 = dma.done [#allocation4], 128
    $region37: #{tpu_custom_call.1} parent=1 // pred_fallthru
      _
    // Predicated region
    $region38: #{tpu_custom_call.1} parent=1 // pred_check
      _
    $region39: #{tpu_custom_call.1} parent=1 // pred_check_branch
      %126 = sbr.rel (0) target = $region41
    $region40: #{tpu_custom_call.1} parent=1 // pred_region
      %127 = dma.done [#allocation9], 128
    $region41: #{tpu_custom_call.1} parent=1 // pred_fallthru
      _
    %128 = vsyncpa [#allocation3], 1
    %129 = vsyncpa [#allocation6], 1
    %130 = vsyncpa [#allocation4], 1
    %131 = vsyncpa [#allocation9], 1

</llo_original>
